<compile_context>
chip_gen: v7x
topology: tpu7x:2x2x1
jax: 0.10.0
libtpu: 0.0.40
codegen_flags: <defaults>
</compile_context>

<pallas_src>
import jax
import jax.numpy as jnp
from jax import lax
from jax.experimental import pallas as pl
from jax.experimental.pallas import tpu as pltpu


def _round_up(x, m):
    return ((x + m - 1) // m) * m


# ----------------------------------------------------------------------------
# Pallas kernel: fused (W_flat @ patches_tile) + bias + ReLU, lane-dense in M
# ----------------------------------------------------------------------------
def _conv_mm_relu_kernel(w_ref, b_ref, p_ref, o_ref):
    # w_ref: (Cout, K)   flattened conv weight            (whole, resident)
    # b_ref: (Cout, 1)   bias, broadcast over lanes       (whole, resident)
    # p_ref: (K, TM)     im2col patches, M in the lane dim
    # o_ref: (Cout, TM)  output tile, M in the lane dim
    acc = jnp.dot(w_ref[...], p_ref[...], preferred_element_type=jnp.float32)
    acc = acc + b_ref[...]
    o_ref[...] = jnp.maximum(acc, 0.0).astype(o_ref.dtype)


def _make_compiler_params():
    # allow_input_fusion=[w, b, patches]: let XLA fuse the pad/reshape/transpose
    # im2col producer into the patches operand instead of round-tripping it
    # through HBM (biggest item in the perf review).  Fall back gracefully if
    # this jax version's CompilerParams lacks the field.
    try:
        return pltpu.CompilerParams(
            dimension_semantics=("parallel", "parallel"),
            allow_input_fusion=[False, False, True])
    except TypeError:
        return pltpu.CompilerParams(
            dimension_semantics=("parallel", "parallel"))


def _conv_mm_relu(w_flat, bias_col, patches_t, *, tm):
    """patches_t: (N, K, Mpad) with Mpad % tm == 0; returns (N, Cout, Mpad)."""
    N, K, Mpad = patches_t.shape
    Cout = w_flat.shape[0]
    n_m = Mpad // tm

    flops = 2 * N * Mpad * K * Cout
    bytes_accessed = 4 * (N * K * Mpad + N * Cout * Mpad + Cout * K + Cout)

    return pl.pallas_call(
        _conv_mm_relu_kernel,
        out_shape=jax.ShapeDtypeStruct((N, Cout, Mpad), jnp.float32),
        grid_spec=pltpu.PrefetchScalarGridSpec(
            num_scalar_prefetch=0,
            grid=(N, n_m),
            in_specs=[
                pl.BlockSpec((Cout, K), lambda n, m: (0, 0)),         # weight
                pl.BlockSpec((Cout, 1), lambda n, m: (0, 0)),         # bias
                pl.BlockSpec((None, K, tm), lambda n, m: (n, 0, m)),  # patches
            ],
            out_specs=pl.BlockSpec((None, Cout, tm), lambda n, m: (n, 0, m)),
        ),
        compiler_params=_make_compiler_params(),
        cost_estimate=pl.CostEstimate(
            flops=flops, transcendentals=0, bytes_accessed=bytes_accessed),
    )(w_flat, bias_col, patches_t)


# ----------------------------------------------------------------------------
# Embedding forward: Conv2d(3, 3, k=3, stride=3, pad=1) -> ReLU
# ----------------------------------------------------------------------------
@jax.jit
def embedding_forward(x_nchw, weight, bias):
    """x_nchw: (N, 3, H, W); weight: (3, 3, 3, 3); bias: (3,)."""
    N, C, H, W = x_nchw.shape
    Cout, Cin, KH, KW = weight.shape
    stride = 3
    pad = 1
    assert C == Cin
    # The pad+reshape im2col below is only valid for non-overlapping windows.
    assert stride == KH == KW, "kernel assumes stride == kernel size"
    Ho = (H + 2 * pad - KH) // stride + 1
    Wo = (W + 2 * pad - KW) // stride + 1
    K = C * KH * KW
    M = Ho * Wo

    # --- glue (single producer chain under jit, fusible into the pallas
    # operand): pad, split non-overlapping 3x3 windows, bring (c, kh, kw)
    # together as the contraction axis with M = Ho*Wo lane-dense.
    x_pad = jnp.pad(x_nchw, ((0, 0), (0, 0), (pad, pad), (pad, pad)))
    x_pad = x_pad[:, :, :stride * Ho, :stride * Wo]
    cols = x_pad.reshape(N, C, Ho, KH, Wo, KW)
    cols = cols.transpose(0, 1, 3, 5, 2, 4).reshape(N, K, M)  # (c,kh,kw)-major K
    if cols.dtype != jnp.float32:
        cols = cols.astype(jnp.float32)

    # Tile M into large lane-dense tiles (HBM-bound: amortize per-step
    # overhead, lengthen DMAs).  Guarantee >= 2 parallel grid steps so a
    # single-image call still feeds both v7x TensorCores.
    TM_MAX = 8192
    tm = min(TM_MAX, _round_up(M, 128))
    if N * pl.cdiv(M, tm) == 1 and tm > 128:
        tm = _round_up(pl.cdiv(M, 2), 128)
    n_m = pl.cdiv(M, tm)
    Mpad = n_m * tm
    if Mpad != M:
        cols = jnp.pad(cols, ((0, 0), (0, 0), (0, Mpad - M)))

    w_flat = weight.reshape(Cout, K).astype(jnp.float32)   # (Cout, K)
    b_col = bias.reshape(Cout, 1).astype(jnp.float32)

    # --- hot path: Pallas fused matmul + bias + ReLU ---
    out = _conv_mm_relu(w_flat, b_col, cols, tm=tm)

    # Output is already NCHW-flattened: crop the M padding, free reshape.
    # (Padded M columns hold relu(bias); they are never consumed.)
    return out[:, :, :M].reshape(N, Cout, Ho, Wo)


if __name__ == "__main__":
    key = jax.random.PRNGKey(0)
    kx, kw, kb = jax.random.split(key, 3)

    # small shapes consistent with the module: N=2, C=3, H=W=16
    x = jax.random.normal(kx, (2, 3, 16, 16), dtype=jnp.float32)

    # deterministic Conv2d init, PyTorch-style uniform(-1/sqrt(fan_in), ...)
    fan_in = 3 * 3 * 3
    bound = 1.0 / (fan_in ** 0.5)
    weight = jax.random.uniform(kw, (3, 3, 3, 3), jnp.float32, -bound, bound)
    bias = jax.random.uniform(kb, (3,), jnp.float32, -bound, bound)

    out = embedding_forward(x, weight, bias)
    jax.block_until_ready(out)

    # reference check against XLA conv (same semantics: stride=3, pad=1) + relu
    ref = lax.conv_general_dilated(
        x, weight, window_strides=(3, 3), padding=((1, 1), (1, 1)),
        dimension_numbers=("NCHW", "OIHW", "NCHW"))
    ref = jnp.maximum(ref + bias.reshape(1, 3, 1, 1), 0.0)
    assert out.shape == (2, 3, 6, 6), out.shape
    assert jnp.allclose(out, ref, atol=1e-5, rtol=1e-5)

    print("KERNEL_OK")
</pallas_src>

<mosaic_0001>
module attributes {stable_mosaic.version = 11 : i64} {
  func.func @_conv_mm_relu_kernel(%arg0: i32, %arg1: i32, %arg2: memref<3x27xf32, #tpu.memory_space<vmem>>, %arg3: memref<3x1xf32, #tpu.memory_space<vmem>>, %arg4: memref<1x27x128xf32, #tpu.memory_space<vmem>>, %arg5: memref<1x3x128xf32, #tpu.memory_space<vmem>>) attributes {dimension_semantics = [#tpu.dimension_semantics<parallel>, #tpu.dimension_semantics<parallel>], iteration_bounds = array<i64: 2, 1>, scalar_prefetch = 0 : i64, scratch_operands = 0 : i64, tpu.core_type = #tpu.core_type<tc>, window_params = [{pipeline_mode = #tpu.pipeline_mode<synchronous>, transform_indices = @transform_0, window_bounds = array<i64: 3, 27>}, {pipeline_mode = #tpu.pipeline_mode<synchronous>, transform_indices = @transform_1, window_bounds = array<i64: 3, 1>}, {transform_indices = @transform_2, window_bounds = array<i64: 1, 27, 128>}, {transform_indices = @transform_3, window_bounds = array<i64: 1, 3, 128>}]} {
    %c0 = arith.constant 0 : index
    %c0_0 = arith.constant 0 : index
    %0 = vector.load %arg2[%c0, %c0_0] : memref<3x27xf32, #tpu.memory_space<vmem>>, vector<3x27xf32>
    %c0_1 = arith.constant 0 : index
    %c0_2 = arith.constant 0 : index
    %c0_3 = arith.constant 0 : index
    %1 = vector.load %arg4[%c0_1, %c0_2, %c0_3] : memref<1x27x128xf32, #tpu.memory_space<vmem>>, vector<1x27x128xf32>
    %2 = vector.shape_cast %1 : vector<1x27x128xf32> to vector<27x128xf32>
    %cst = arith.constant dense<0.000000e+00> : vector<3x128xf32>
    %3 = tpu.matmul %0, %2, %cst {dimension_numbers = #tpu.dot_dimension_numbers<[1], [0], [0], [1], [0, 0, 1, 1], [], []>} : vector<3x27xf32>, vector<27x128xf32>, vector<3x128xf32> -> vector<3x128xf32>
    %c0_4 = arith.constant 0 : index
    %c0_5 = arith.constant 0 : index
    %4 = vector.load %arg3[%c0_4, %c0_5] : memref<3x1xf32, #tpu.memory_space<vmem>>, vector<3x1xf32>
    %5 = vector.broadcast %4 : vector<3x1xf32> to vector<3x128xf32>
    %6 = arith.addf %3, %5 : vector<3x128xf32>
    %cst_6 = arith.constant 0.000000e+00 : f32
    %7 = vector.broadcast %cst_6 : f32 to vector<3x128xf32>
    %8 = arith.maximumf %6, %7 : vector<3x128xf32>
    %c0_7 = arith.constant 0 : index
    %c0_8 = arith.constant 0 : index
    %c0_9 = arith.constant 0 : index
    %9 = vector.load %arg5[%c0_7, %c0_8, %c0_9] : memref<1x3x128xf32, #tpu.memory_space<vmem>>, vector<1x3x128xf32>
    %10 = vector.shape_cast %9 : vector<1x3x128xf32> to vector<3x128xf32>
    %11 = vector.shape_cast %8 : vector<3x128xf32> to vector<1x3x128xf32>
    tpu.vector_store %arg5[%c0_7, %c0_8, %c0_9], %11 {strides = array<i32>} : memref<1x3x128xf32, #tpu.memory_space<vmem>>, vector<1x3x128xf32>,
    return
  }
  func.func @transform_0(%arg0: i32, %arg1: i32) -> (i32, i32) {
    %c0_i32 = arith.constant 0 : i32
    %c0_i32_0 = arith.constant 0 : i32
    %c0_i32_1 = arith.constant 0 : i32
    return %c0_i32, %c0_i32_0 : i32, i32
  }
  func.func @transform_1(%arg0: i32, %arg1: i32) -> (i32, i32) {
    %c0_i32 = arith.constant 0 : i32
    %c0_i32_0 = arith.constant 0 : i32
    %c0_i32_1 = arith.constant 0 : i32
    return %c0_i32, %c0_i32_0 : i32, i32
  }
  func.func @transform_2(%arg0: i32, %arg1: i32) -> (i32, i32, i32) {
    %c0_i32 = arith.constant 0 : i32
    %c0_i32_0 = arith.constant 0 : i32
    return %arg0, %c0_i32, %arg1 : i32, i32, i32
  }
  func.func @transform_3(%arg0: i32, %arg1: i32) -> (i32, i32, i32) {
    %c0_i32 = arith.constant 0 : i32
    %c0_i32_0 = arith.constant 0 : i32
    return %arg0, %c0_i32, %arg1 : i32, i32, i32
  }
}

</mosaic_0001>

<llo_original>
// kernel: embedding_forward.2
$region0: #{embedding_forward.2}
  #allocation0 [shape = 'u32[]', space=smem, size = 0x4, offset = 0x4, fixed_abs, tag = 'smem constant byte address 0x4 - core index']
  #allocation1 [shape = 'u32[144,128]{1,0:T(1,128)}', space=vmem, size = 0x12000, scoped, tag = 'internal scratch']
  #allocation2 [shape = 'u32[2048]{0}', space=vmem, size = 0x2000, scoped, tag = 'scoped memory for embedding_forward.2']
  #allocation3 [shape = 'u32[2048]{0}', space=vmem, size = 0x2000, scoped, tag = 'scoped memory for embedding_forward.2']
  #allocation4 [shape = 'u32[2048]{0}', space=vmem, size = 0x2000, scoped, tag = 'scoped memory for embedding_forward.2']
  #allocation5 [shape = 'u32[2048]{0}', space=vmem, size = 0x2000, scoped, tag = 'scoped memory for embedding_forward.2']
  #allocation6 [shape = 'u32[2048]{0}', space=vmem, size = 0x2000, scoped, tag = 'scoped memory for embedding_forward.2']
  %s0 = inlined_call_operand.vmem [shape: f32[3,27], index: 0, kind: input, shape index: {}]
  %s1 = inlined_call_operand.vmem [shape: f32[3,1], index: 1, kind: input, shape index: {}]
  %s2 = inlined_call_operand.vmem [shape: f32[2,27,36], index: 2, kind: input, shape index: {}]
  %s3 = inlined_call_operand.<no memory space> [shape: f32[], index: 3, kind: input, shape index: {}]
  %s4 = inlined_call_operand.vmem [shape: f32[2,3,128], index: 4, kind: output, shape index: {}]
  %s5 = sld [smem:[#allocation0]]
  $region45: #{embedding_forward.2} parent=0
    _
  %s7 = ssub.s32 1, %s5
  %s8 = scalar_select 0, %s7, %s5
  %v9 = vstv %s3
  loop: start=0, step=1, limit=4
  $region2: #{embedding_forward.2} parent=0 // loop_pre_header
    _
  $region3: #{embedding_forward.2} parent=0 // loop_header
    %s11 = sphi 0, %s15
    %p12 = scmp.ge.s32.totalorder %s11, 4
    %s18 = sphi 0, %s30
    %s19 = sphi 0, %s26
    %s20 = sphi 0, %s18
    %s21 = sphi 0, %s19
    %s22 = sphi 0, %s20
    %s23 = sphi 0, %s21
    %s31 = sphi 0, %s31
    %s33 = sphi 0, %s31
    %s34 = sphi 0, %s33
    %s48 = sphi 0, %s34
    %s52 = sphi 0, %s52
    %s54 = sphi 0, %s52
    %s55 = sphi 0, %s54
    %s69 = sphi 0, %s55
    %s77 = sphi 0, %s79
    %s80 = sphi 0, %s77
    %s81 = sphi 0, %s80
    %s97 = sphi 0, %s81
    %s105 = sphi 0, %s107
    %s108 = sphi 0, %s105
    %s109 = sphi 0, %s108
    %s125 = sphi 0, %s109
  $region4: #{embedding_forward.2} parent=0 // loop_header_branch
    %14 = sbr.rel (%p12) target = $region8
  $region5: #{embedding_forward.2} parent=0 // loop_body
    %s16 = ssub.s32 %s11, 1
    %s17 = ssub.s32 %s11, 2
    %s24 = sadd.s32 1, %s19
    %p25 = scmp.ge.s32.totalorder %s24, 1
    %s26 = scalar_select %p25, 0, %s24
    %s27 = sadd.s32 1, %s18
    %s28 = scalar_select %p25, %s27, %s18
    %p29 = scmp.ge.s32.totalorder %s28, 2
    %s30 = scalar_select %p29, 0, %s28
    %s32 = sadd.s32 %s31, 1
    %p35 = scmp.eq.s32.totalorder %s11, 1
    %p36 = scmp.ne.s32.totalorder %s31, %s33
    %p37 = scmp.eq.s32.totalorder %s11, 0
    %p38 = por %p36, %p37
    %p39 = scmp.ne.s32.totalorder %s31, %s33
    %p40 = scmp.eq.s32.totalorder %s16, 1
    %p41 = por %p39, %p40
    %p42 = scmp.ne.s32.totalorder %s33, %s34
    %p43 = scmp.eq.s32.totalorder %s16, 0
    %p44 = por %p42, %p43
    %p45 = scmp.ne.s32.totalorder %s33, %s34
    %p46 = scmp.eq.s32.totalorder %s17, 1
    %p47 = por %p45, %p46
    %p49 = scmp.ne.s32.totalorder %s34, %s48
    %p50 = scmp.eq.s32.totalorder %s17, 0
    %p51 = por %p49, %p50
    %s53 = sadd.s32 %s52, 1
    %p56 = scmp.eq.s32.totalorder %s11, 1
    %p57 = scmp.ne.s32.totalorder %s52, %s54
    %p58 = scmp.eq.s32.totalorder %s11, 0
    %p59 = por %p57, %p58
    %p60 = scmp.ne.s32.totalorder %s52, %s54
    %p61 = scmp.eq.s32.totalorder %s16, 1
    %p62 = por %p60, %p61
    %p63 = scmp.ne.s32.totalorder %s54, %s55
    %p64 = scmp.eq.s32.totalorder %s16, 0
    %p65 = por %p63, %p64
    %p66 = scmp.ne.s32.totalorder %s54, %s55
    %p67 = scmp.eq.s32.totalorder %s17, 1
    %p68 = por %p66, %p67
    %p70 = scmp.ne.s32.totalorder %s55, %s69
    %p71 = scmp.eq.s32.totalorder %s17, 0
    %p72 = por %p70, %p71
    %s73 = ssub.s32 %s18, %s30
    %s74 = ssub.s32 %s19, %s26
    %s75 = sor.u32 %s73, %s74
    %p76 = scmp.eq.s32.totalorder %s75, 0
    %s78 = sadd.s32 %s77, 1
    %s79 = scalar_select %p76, %s77, %s78
    %p82 = pneg %p76
    %p83 = scmp.eq.s32.totalorder %s11, 1
    %p84 = por %p82, %p83
    %p85 = scmp.ne.s32.totalorder %s77, %s80
    %p86 = scmp.eq.s32.totalorder %s11, 0
    %p87 = por %p85, %p86
    %p88 = scmp.ne.s32.totalorder %s77, %s80
    %p89 = scmp.eq.s32.totalorder %s16, 1
    %p90 = por %p88, %p89
    %p91 = scmp.ne.s32.totalorder %s80, %s81
    %p92 = scmp.eq.s32.totalorder %s16, 0
    %p93 = por %p91, %p92
    %p94 = scmp.ne.s32.totalorder %s80, %s81
    %p95 = scmp.eq.s32.totalorder %s17, 1
    %p96 = por %p94, %p95
    %p98 = scmp.ne.s32.totalorder %s81, %s97
    %p99 = scmp.eq.s32.totalorder %s17, 0
    %p100 = por %p98, %p99
    %s101 = ssub.s32 %s18, %s30
    %s102 = ssub.s32 %s19, %s26
    %s103 = sor.u32 %s101, %s102
    %p104 = scmp.eq.s32.totalorder %s103, 0
    %s106 = sadd.s32 %s105, 1
    %s107 = scalar_select %p104, %s105, %s106
    %p110 = pneg %p104
    %p111 = scmp.eq.s32.totalorder %s11, 1
    %p112 = por %p110, %p111
    %p113 = scmp.ne.s32.totalorder %s105, %s108
    %p114 = scmp.eq.s32.totalorder %s11, 0
    %p115 = por %p113, %p114
    %p116 = scmp.ne.s32.totalorder %s105, %s108
    %p117 = scmp.eq.s32.totalorder %s16, 1
    %p118 = por %p116, %p117
    %p119 = scmp.ne.s32.totalorder %s108, %s109
    %p120 = scmp.eq.s32.totalorder %s16, 0
    %p121 = por %p119, %p120
    %p122 = scmp.ne.s32.totalorder %s108, %s109
    %p123 = scmp.eq.s32.totalorder %s17, 1
    %p124 = por %p122, %p123
    %p126 = scmp.ne.s32.totalorder %s109, %s125
    %p127 = scmp.eq.s32.totalorder %s17, 0
    %p128 = por %p126, %p127
    %p129 = scmp.le.s32.totalorder 1, %s11
    %p130 = scmp.lt.s32.totalorder %s11, 3
    %p131 = pnand %p129, %p130
    %p132 = pneg %p131
    // Predicated region
    $region9: #{embedding_forward.2} parent=5 // pred_check
      _
    $region10: #{embedding_forward.2} parent=5 // pred_check_branch
      %134 = sbr.rel (%p131) target = $region12
    $region11: #{embedding_forward.2} parent=5 // pred_region
      %s135 = ssub.s32 %s11, 1
      // Predicated region
      $region13: #{embedding_forward.2} parent=11 // pred_check
        %p136 = pneg %p44
      $region14: #{embedding_forward.2} parent=11 // pred_check_branch
        %138 = sbr.rel (%p136) target = $region16
      $region15: #{embedding_forward.2} parent=11 // pred_region
        _
      $region16: #{embedding_forward.2} parent=11 // pred_fallthru
        _
      // Predicated region
      $region17: #{embedding_forward.2} parent=11 // pred_check
        %p139 = pneg %p65
      $region18: #{embedding_forward.2} parent=11 // pred_check_branch
        %141 = sbr.rel (%p139) target = $region20
      $region19: #{embedding_forward.2} parent=11 // pred_region
        _
      $region20: #{embedding_forward.2} parent=11 // pred_fallthru
        _
    $region12: #{embedding_forward.2} parent=5 // pred_fallthru
      _
    %p142 = scmp.lt.s32.totalorder %s11, 2
    // Predicated region
    $region21: #{embedding_forward.2} parent=5 // pred_check
      %p143 = pneg %p142
    $region22: #{embedding_forward.2} parent=5 // pred_check_branch
      %145 = sbr.rel (%p143) target = $region24
    $region23: #{embedding_forward.2} parent=5 // pred_region
      // Predicated region
      $region25: #{embedding_forward.2} parent=23 // pred_check
        %p146 = pneg %p87
      $region26: #{embedding_forward.2} parent=23 // pred_check_branch
        %148 = sbr.rel (%p146) target = $region28
      $region27: #{embedding_forward.2} parent=23 // pred_region
        %s149 = ssub.s32 1, %s19
        %s150 = smul.u32 512, %s149
        %p151 = scmp.lt.s32.totalorder %s18, 1
        %s152 = scalar_select %p151, %s18, 1
        %p153 = scmp.lt.s32.totalorder %s19, 0
        %s154 = scalar_select %p153, %s19, 0
        %s155 = smul.addr %s152, 4
        %s156 = sadd.s32 %s154, %s155
        %s157 = smul.addr %s156, 8
        %s158 = scalar_lea.vmem %s2, %s157
        %s159 = ssub.s32 1, %s19
        %s160 = smul.u32 512, %s159
      $region28: #{embedding_forward.2} parent=23 // pred_fallthru
        _
    $region24: #{embedding_forward.2} parent=5 // pred_fallthru
      _
    %p161 = scmp.le.s32.totalorder 1, %s11
    %p162 = scmp.lt.s32.totalorder %s11, 3
    %p163 = pnand %p161, %p162
    %p164 = pneg %p163
    // Predicated region
    $region29: #{embedding_forward.2} parent=5 // pred_check
      _
    $region30: #{embedding_forward.2} parent=5 // pred_check_branch
      %166 = sbr.rel (%p163) target = $region32
    $region31: #{embedding_forward.2} parent=5 // pred_region
      #allocation7 [shape = 'u8[16384]{0}', space=vmem, size = 0x4000, dematerialized = true, scoped, tag = 'FusionAdapter Buffer %fusion.1 = f32[2,27,128]{2,1,0:T(8,128)} fusion(%param_2.1, %param_3), kind=kLoop, calls=%fused_computation.1.clone, metadata={op_name="jit(embedding_forward)/jit(_pad)/pad" stack_frame_id=10}']
      %s167 = ssub.s32 %s11, 1
      %p168 = pneg %p44
      %p169 = pneg %p41
      %p170 = pneg %p65
      %p171 = pneg %p62
      %s172 = ssub.s32 1, %s21
      %s173 = smul.u32 512, %s172
      %p174 = scmp.lt.s32.totalorder %s20, 1
      %s175 = scalar_select %p174, %s20, 1
      %p176 = scmp.lt.s32.totalorder %s21, 0
      %s177 = scalar_select %p176, %s21, 0
      %s178 = smul.addr %s175, 4
      %s179 = sadd.s32 %s177, %s178
      %s180 = smul.addr %s179, 8
      %s181 = scalar_lea.vmem %s2, %s180
      %p182 = pneg %p93
      %p183 = pneg %p90
      %p184 = pneg %p121
      %p185 = pneg %p118
      %p186 = scmp.lt.s32.totalorder %s20, 1
      %s187 = scalar_select %p186, %s20, 1
      %p188 = scmp.lt.s32.totalorder %s21, 0
      %s189 = scalar_select %p188, %s21, 0
      %s190 = sadd.s32 %s189, %s187
      %s191 = smul.addr %s190, 4
      %s192 = scalar_lea.vmem %s4, %s191
      %s193 = ssub.s32 1, %s21
      %s194 = smul.u32 512, %s193
      %p195 = scmp.lt.s32.totalorder %s20, 1
      %s196 = scalar_select %p195, %s20, 1
      %p197 = scmp.lt.s32.totalorder %s21, 0
      %s198 = scalar_select %p197, %s21, 0
      %s199 = smul.addr %s196, 4
      %s200 = sadd.s32 %s198, %s199
      %s201 = smul.addr %s200, 8
      %s202 = scalar_lea.vmem %s2, %s201
      %s203 = ssub.s32 1, %s21
      %s204 = smul.u32 512, %s203
      %p205 = scmp.lt.s32.totalorder %s20, 1
      %s206 = scalar_select %p205, %s20, 1
      %p207 = scmp.lt.s32.totalorder %s21, 0
      %s208 = scalar_select %p207, %s21, 0
      %s209 = sadd.s32 %s208, %s206
      %s210 = smul.addr %s209, 4
      %s211 = scalar_lea.vmem %s4, %s210
      %s212 = ssub.s32 0, %s21
      %p213 = scmp.lt.s32.totalorder %s212, 0
      %s214 = scalar_select %p213, 0, 255
      %v215 = vld [vmem:[%s202] sm:%s214]
      %s216 = ssub.s32 0, %s21
      %v217 = vstv %s216
      %vm218 = vcmp.lt.s32.totalorder %v217, 0
      %v219 = vsel %vm218, %v9, %v215
      %v220 = vlaneseq
      %v221 = vshrl.u32 %v220, 7
      %vm223 = vcmp.lt.s32.totalorder %v221, 27
      %v224 = vsel %vm223, %v219, %v9
      %s225 = smul.addr %s21, 128
      %v226 = vlaneseq
      %v227 = vand.u32 %v226, 127
      %v228 = vstv %s225
      %v229 = vadd.s32 %v227, %v228
      %vm230 = vcmp.lt.s32.totalorder %v229, 36
      %v231 = vsel %vm230, %v224, %v9
      %233 = vst [vmem:[#allocation7] sm:$0xff] %v231
      %s234 = scalar_lea.vmem %s202, 8
      %s235 = ssub.s32 0, %s21
      %p236 = scmp.lt.s32.totalorder %s235, 0
      %s237 = scalar_select %p236, 0, 255
      %v238 = vld [vmem:[%s234] sm:%s237]
      %s239 = ssub.s32 0, %s21
      %v240 = vstv %s239
      %vm241 = vcmp.lt.s32.totalorder %v240, 0
      %v242 = vsel %vm241, %v9, %v238
      %v243 = vlaneseq
      %v244 = vshrl.u32 %v243, 7
      %v245 = vadd.s32 %v244, 8
      %vm246 = vcmp.lt.s32.totalorder %v245, 27
      %v247 = vsel %vm246, %v242, %v9
      %s248 = smul.addr %s21, 128
      %v249 = vlaneseq
      %v250 = vand.u32 %v249, 127
      %v251 = vstv %s248
      %v252 = vadd.s32 %v250, %v251
      %vm253 = vcmp.lt.s32.totalorder %v252, 36
      %v254 = vsel %vm253, %v247, %v9
      %s255 = scalar_lea.vmem [#allocation7], 8
      %257 = vst [vmem:[%s255] sm:$0xff] %v254
      %s258 = scalar_lea.vmem %s202, 16
      %s259 = ssub.s32 0, %s21
      %p260 = scmp.lt.s32.totalorder %s259, 0
      %s261 = scalar_select %p260, 0, 255
      %v262 = vld [vmem:[%s258] sm:%s261]
      %s263 = ssub.s32 0, %s21
      %v264 = vstv %s263
      %vm265 = vcmp.lt.s32.totalorder %v264, 0
      %v266 = vsel %vm265, %v9, %v262
      %v267 = vlaneseq
      %v268 = vshrl.u32 %v267, 7
      %v269 = vadd.s32 %v268, 16
      %vm270 = vcmp.lt.s32.totalorder %v269, 27
      %v271 = vsel %vm270, %v266, %v9
      %s272 = smul.addr %s21, 128
      %v273 = vlaneseq
      %v274 = vand.u32 %v273, 127
      %v275 = vstv %s272
      %v276 = vadd.s32 %v274, %v275
      %vm277 = vcmp.lt.s32.totalorder %v276, 36
      %v278 = vsel %vm277, %v271, %v9
      %s279 = scalar_lea.vmem [#allocation7], 16
      %281 = vst [vmem:[%s279] sm:$0xff] %v278
      %s282 = scalar_lea.vmem %s202, 24
      %s283 = ssub.s32 0, %s21
      %p284 = scmp.lt.s32.totalorder %s283, 0
      %s285 = scalar_select %p284, 0, 255
      %v286 = vld [vmem:[%s282] sm:%s285]
      %s287 = ssub.s32 0, %s21
      %v288 = vstv %s287
      %vm289 = vcmp.lt.s32.totalorder %v288, 0
      %v290 = vsel %vm289, %v9, %v286
      %v291 = vlaneseq
      %v292 = vshrl.u32 %v291, 7
      %v293 = vadd.s32 %v292, 24
      %vm294 = vcmp.lt.s32.totalorder %v293, 27
      %v295 = vsel %vm294, %v290, %v9
      %s296 = smul.addr %s21, 128
      %v297 = vlaneseq
      %v298 = vand.u32 %v297, 127
      %v299 = vstv %s296
      %v300 = vadd.s32 %v298, %v299
      %vm301 = vcmp.lt.s32.totalorder %v300, 36
      %v302 = vsel %vm301, %v295, %v9
      %s303 = scalar_lea.vmem [#allocation7], 24
      %305 = vst [vmem:[%s303] sm:$0xff] %v302
      %v306 = vld [vmem:[%s0] sm:$0x7]
      %v307 = vld [vmem:[#allocation7] sm:$0xff]
      %v308 = vld [vmem:[#allocation7 + $0x8] sm:$0xff]
      %v309 = vld [vmem:[#allocation7 + $0x10] sm:$0xff]
      %v310 = vld [vmem:[#allocation7 + $0x18] sm:$0x7]
      %v311 = vld [vmem:[%s1] sm:$0x7]
      %313 = vset.pattern.permute.xlu0 0
      %314 = vperm.xlu0 %313, %v311
      %v315 = vpop.permute.xlu0 %314
      %vm317 = vcmask 220160
      %v319 = vsel %vm317, %v306, 0
      %vm321 = vcmask 1042432
      %v323 = vsel %vm321, %v310, 0
      %325 = vmatprep.subr.mxu0 0.0
      %326 = vmatpush1.msra.mxu0 %v307
      %327 = vmatprep.subr.mxu0 0.0
      %328 = vmatpush1.msra.mxu0 %v308
      %329 = vmatprep.subr.mxu0 0.0
      %330 = vmatpush1.msra.mxu0 %v309
      %331 = vmatprep.subr.mxu0 0.0
      %332 = vmatpush1.msra.mxu0 %v323
      %333 = vmatprep.subr.mxu0 0.0
      %334 = vmatpush1.msra.mxu0 0.0
      %335 = vmatprep.subr.mxu0 0.0
      %336 = vmatpush1.msra.mxu0 0.0
      %337 = vmatprep.subr.mxu0 0.0
      %338 = vmatpush1.msra.mxu0 0.0
      %339 = vmatprep.subr.mxu0 0.0
      %340 = vmatpush1.msra.mxu0 0.0
      %341 = vmatprep.subr.mxu0 0.0
      %342 = vmatpush1.msra.mxu0 0.0
      %343 = vmatprep.subr.mxu0 0.0
      %344 = vmatpush1.msra.mxu0 0.0
      %345 = vmatprep.subr.mxu0 0.0
      %346 = vmatpush1.msra.mxu0 0.0
      %347 = vmatprep.subr.mxu0 0.0
      %348 = vmatpush1.msra.mxu0 0.0
      %349 = vmatprep.subr.mxu0 0.0
      %350 = vmatpush1.msra.mxu0 0.0
      %351 = vmatprep.subr.mxu0 0.0
      %352 = vmatpush1.msra.mxu0 0.0
      %353 = vmatprep.subr.mxu0 0.0
      %354 = vmatpush1.msra.mxu0 0.0
      %355 = vmatprep.subr.mxu0 0.0
      %356 = vmatpush1.msra.mxu0 0.0
      %357 = vmatprep.subr.mxu0 0.0
      %358 = vmatpush1.msra.mxu0 0.0
      %359 = vmatprep.subr.mxu0 0.0
      %360 = vmatpush1.msra.mxu0 0.0
      %361 = vmatprep.subr.mxu0 0.0
      %362 = vmatpush1.msra.mxu0 0.0
      %363 = vmatprep.subr.mxu0 0.0
      %364 = vmatpush1.msra.mxu0 0.0
      %365 = vmatprep.subr.mxu0 0.0
      %366 = vmatpush1.msra.mxu0 0.0
      %367 = vmatprep.subr.mxu0 0.0
      %368 = vmatpush1.msra.mxu0 0.0
      %369 = vmatprep.subr.mxu0 0.0
      %370 = vmatpush1.msra.mxu0 0.0
      %371 = vmatprep.subr.mxu0 0.0
      %372 = vmatpush1.msra.mxu0 0.0
      %373 = vmatprep.subr.mxu0 0.0
      %374 = vmatpush1.msra.mxu0 0.0
      %375 = vmatprep.subr.mxu0 0.0
      %376 = vmatpush1.msra.mxu0 0.0
      %377 = vmatprep.subr.mxu0 0.0
      %378 = vmatpush1.msra.mxu0 0.0
      %379 = vmatprep.subr.mxu0 0.0
      %380 = vmatpush1.msra.mxu0 0.0
      %381 = vmatprep.subr.mxu0 0.0
      %382 = vmatpush1.msra.mxu0 0.0
      %383 = vmatprep.subr.mxu0 0.0
      %384 = vmatpush1.msra.mxu0 0.0
      %385 = vmatprep.subr.mxu0 0.0
      %386 = vmatpush1.msra.mxu0 0.0
      %387 = vmatprep.subr.mxu0 0.0
      %388 = vmatpush1.msra.mxu0 0.0
      %389 = vmatprep.mubr.f32.mxu0 0.0
      %390 = vmatmul.mubr.f32.gmra.mrb[0].mxu0 %v319
      %v391 = vpop.f32.mrb[0].mxu0
      %v392 = vadd.f32 %v315, %v391
      %v393 = vpop.f32.mrb[0].mxu0
      %394 = vdwg.mxu0
      %v395 = vmax.f32 %v392, 0.0
      %396 = vst [vmem:[%s211] sm:$0x7] %v395
      %p397 = scmp.lt.s32.totalorder %s20, 1
      %s398 = scalar_select %p397, %s20, 1
      %p399 = scmp.lt.s32.totalorder %s21, 0
      %s400 = scalar_select %p399, %s21, 0
      %s401 = sadd.s32 %s400, %s398
      %s402 = smul.addr %s401, 4
      %s403 = scalar_lea.vmem %s4, %s402
      // Predicated region
      $region33: #{embedding_forward.2} parent=31 // pred_check
        %p404 = pneg %p118
      $region34: #{embedding_forward.2} parent=31 // pred_check_branch
        %406 = sbr.rel (%p404) target = $region36
      $region35: #{embedding_forward.2} parent=31 // pred_region
        _
      $region36: #{embedding_forward.2} parent=31 // pred_fallthru
        _
    $region32: #{embedding_forward.2} parent=5 // pred_fallthru
      _
    %p407 = scmp.le.s32.totalorder 2, %s11
    // Predicated region
    $region37: #{embedding_forward.2} parent=5 // pred_check
      %p408 = pneg %p407
    $region38: #{embedding_forward.2} parent=5 // pred_check_branch
      %410 = sbr.rel (%p408) target = $region40
    $region39: #{embedding_forward.2} parent=5 // pred_region
      %s411 = ssub.s32 %s11, 2
      // Predicated region
      $region41: #{embedding_forward.2} parent=39 // pred_check
        %p412 = pneg %p124
      $region42: #{embedding_forward.2} parent=39 // pred_check_branch
        %414 = sbr.rel (%p412) target = $region44
      $region43: #{embedding_forward.2} parent=39 // pred_region
        %p415 = scmp.lt.s32.totalorder %s22, 1
        %s416 = scalar_select %p415, %s22, 1
        %p417 = scmp.lt.s32.totalorder %s23, 0
        %s418 = scalar_select %p417, %s23, 0
        %s419 = sadd.s32 %s418, %s416
        %s420 = smul.addr %s419, 4
        %s421 = scalar_lea.vmem %s4, %s420
      $region44: #{embedding_forward.2} parent=39 // pred_fallthru
        _
    $region40: #{embedding_forward.2} parent=5 // pred_fallthru
      _
  $region6: #{embedding_forward.2} parent=0 // loop_footer
    %s15 = sadd.s32 1, %s11
  $region7: #{embedding_forward.2} parent=0 // loop_footer_branch
    %10 = sbr.rel target = $region3
  $region8: #{embedding_forward.2} parent=0 // loop_exit
    _

</llo_original>
